<compile_context>
chip_gen: v5e
topology: v5e:2x2
jax: 0.10.0
libtpu: 0.0.40
codegen_flags: <defaults>
</compile_context>

<pallas_src>
import jax
import jax.numpy as jnp
from jax.experimental import pallas as pl
from jax.experimental.pallas import tpu as pltpu

_LANES = 128
_SUBLANES = 8


def _cdiv(a, b):
    return -(-a // b)


def _round_up(a, b):
    return _cdiv(a, b) * b


def _bce_elem(p, t):
    # torch.nn.BCELoss elementwise term: -(t*log(p) + (1-t)*log(1-p)), each log
    # clamped at -100.  Rewritten as -(t*(lp - lq) + lq) to save one VPU mul.
    lp = jnp.maximum(jnp.log(p), -100.0)
    lq = jnp.maximum(jnp.log(1.0 - p), -100.0)
    return -(t * (lp - lq) + lq)


def _default_block_rows(dx, dz, itemsize, target_bytes=4 << 20, max_rows=8192):
    """Rows per step so a step moves a few MB of (lane-padded) VMEM."""
    lane_pad = lambda d: _round_up(max(d, 1), _LANES)
    per_row = (2 * lane_pad(dx) + 2 * lane_pad(dz)) * itemsize
    return int(max(_SUBLANES, min(max_rows, target_bytes // max(per_row, 1))))


def _buf_bytes(rows, cols, itemsize):
    """Conservative padded VMEM footprint of one (rows, cols) buffer."""
    return (_round_up(max(rows, 1), _SUBLANES)
            * _round_up(max(cols, 1), _LANES) * itemsize)


def vfae_loss(x_decoded, x, y_decoded, y, z1_mu, z1_logvar, *,
              alpha=1.0, block_rows=None, core_split=2):
    """VFAELoss with unit-gaussian prior: BCE(x_dec,x) + alpha*BCE(y_dec,y) + KL."""
    B, DX = x.shape
    _, DY = y.shape
    _, DZ = z1_mu.shape
    assert x_decoded.shape == (B, DX)
    assert y_decoded.shape == (B, DY)
    assert z1_logvar.shape == (B, DZ)

    isz = lambda a: jnp.dtype(a.dtype).itemsize
    tiled_inputs = (x_decoded, x, z1_mu, z1_logvar)

    # Sublane multiple depends on the narrowest tiled dtype (8 f32, 16 bf16).
    sub_mult = _SUBLANES * max(1, 4 // max(min(isz(a) for a in tiled_inputs), 1))

    if block_rows is None:
        block_rows = _default_block_rows(DX, DZ, max(isz(a) for a in tiled_inputs))
    TB = _round_up(min(int(block_rows), _round_up(B, sub_mult)), sub_mult)
    num_tiles = _cdiv(B, TB)
    core_split = max(1, int(core_split))
    ntpc = _cdiv(num_tiles, core_split)          # batch tiles handled per core

    # Normalisation constants (incl. alpha, which may be a traced value) as
    # runtime SMEM scalars: 1/(B*DX), alpha/(B*DY), 0.5/B.
    scales = jnp.stack([
        jnp.asarray(1.0 / (B * DX), jnp.float32),
        jnp.asarray(alpha, jnp.float32) / jnp.float32(B * DY),
        jnp.asarray(0.5 / B, jnp.float32),
    ])

    def kernel(scales_ref, xd_ref, x_ref, yd_ref, y_ref, mu_ref, lv_ref,
               out_ref, acc_x_ref, acc_z_ref, acc_y_ref):
        core = pl.program_id(0)
        step = pl.program_id(1)

        @pl.when(step == 0)
        def _init():
            acc_x_ref[...] = jnp.zeros_like(acc_x_ref)
            acc_z_ref[...] = jnp.zeros_like(acc_z_ref)
            acc_y_ref[...] = jnp.zeros_like(acc_y_ref)

        # Tiny y pair: resident full-array block, reduced exactly once.
        @pl.when((step == 0) & (core == 0))
        def _supervised():
            yd = yd_ref[...].astype(jnp.float32)
            yt = y_ref[...].astype(jnp.float32)
            acc_y_ref[...] += jnp.sum(_bce_elem(yd, yt))

        # Row-validity mask: ragged last tile + phantom (clamped) tiles from
        # the core split.  Mask the inputs BEFORE log/exp so garbage lanes can
        # never produce NaN/Inf; masked values are chosen so each term is 0.
        row0 = (core * ntpc + step) * TB
        rows = row0 + jax.lax.broadcasted_iota(jnp.int32, (TB, 1), 0)
        valid = rows < B

        xd = jnp.where(valid, xd_ref[...].astype(jnp.float32), 1.0)
        xt = jnp.where(valid, x_ref[...].astype(jnp.float32), 1.0)
        acc_x_ref[...] += jnp.sum(_bce_elem(xd, xt))

        mu = jnp.where(valid, mu_ref[...].astype(jnp.float32), 0.0)
        lv = jnp.where(valid, lv_ref[...].astype(jnp.float32), 0.0)
        acc_z_ref[...] += jnp.sum(jnp.exp(lv) - lv - 1.0 + mu * mu)

        @pl.when(step == pl.num_programs(1) - 1)
        def _finalize():
            partial = (acc_x_ref[...] * scales_ref[0]
                       + acc_y_ref[...] * scales_ref[1]
                       + acc_z_ref[...] * scales_ref[2])          # (1, 1) f32
            out_ref[...] = jnp.broadcast_to(partial, out_ref.shape)

    def tile_map(c, i):
        # Clamp so no DMA block is ever fully out of bounds; phantom tiles
        # re-read the last real tile and are zeroed by the row mask above.
        return (jnp.minimum(c * ntpc + i, num_tiles - 1), 0)

    const_map = lambda c, i: (0, 0)

    vmem_est = (
        2 * (_buf_bytes(TB, DX, isz(x_decoded)) + _buf_bytes(TB, DX, isz(x))
             + _buf_bytes(TB, DZ, isz(z1_mu)) + _buf_bytes(TB, DZ, isz(z1_logvar))
             + _buf_bytes(B, DY, isz(y_decoded)) + _buf_bytes(B, DY, isz(y)))
        + 3 * _buf_bytes(1, 1, 4)
        + 2 * _buf_bytes(_SUBLANES, _LANES, 4))
    vmem_limit = min(int(vmem_est * 1.5) + (4 << 20), 128 << 20)

    out = pl.pallas_call(
        kernel,
        out_shape=jax.ShapeDtypeStruct((core_split, _SUBLANES, _LANES), jnp.float32),
        grid_spec=pltpu.PrefetchScalarGridSpec(
            num_scalar_prefetch=0,
            grid=(core_split, ntpc),
            in_specs=[
                pl.BlockSpec(memory_space=pltpu.MemorySpace.SMEM),   # scales
                pl.BlockSpec((TB, DX), tile_map),                    # x_decoded
                pl.BlockSpec((TB, DX), tile_map),                    # x
                pl.BlockSpec((B, DY), const_map),                    # y_decoded (resident)
                pl.BlockSpec((B, DY), const_map),                    # y         (resident)
                pl.BlockSpec((TB, DZ), tile_map),                    # z1_mu
                pl.BlockSpec((TB, DZ), tile_map),                    # z1_logvar
            ],
            out_specs=pl.BlockSpec((1, _SUBLANES, _LANES), lambda c, i: (c, 0, 0)),
            scratch_shapes=[
                pltpu.VMEM((1, 1), jnp.float32),   # running sum: reconstruction BCE
                pltpu.VMEM((1, 1), jnp.float32),   # running sum: KL
                pltpu.VMEM((1, 1), jnp.float32),   # supervised BCE sum
            ],
        ),
        compiler_params=pltpu.CompilerParams(
            dimension_semantics=("parallel", "arbitrary"),
            vmem_limit_bytes=vmem_limit),
    )(scales, x_decoded, x, y_decoded, y, z1_mu, z1_logvar)

    # Each core's block is filled with its (broadcast) partial; sum the partials.
    return jnp.sum(out[:, 0, 0])


def vfae_loss_ref(x_decoded, x, y_decoded, y, z1_mu, z1_logvar, *, alpha=1.0):
    """Pure-JAX reference mirroring VFAELoss.forward (zeros prior)."""
    def bce(p, t):
        lp = jnp.maximum(jnp.log(p), -100.0)
        lq = jnp.maximum(jnp.log(1.0 - p), -100.0)
        return jnp.mean(-(t * lp + (1.0 - t) * lq))
    supervised_loss = bce(y_decoded.astype(jnp.float32), y.astype(jnp.float32))
    reconstruction_loss = bce(x_decoded.astype(jnp.float32), x.astype(jnp.float32))
    lv = z1_logvar.astype(jnp.float32)
    mu = z1_mu.astype(jnp.float32)
    per_example_kl = -lv - 1.0 + jnp.exp(lv) + jnp.square(mu)
    kl_loss_z1 = jnp.mean(0.5 * jnp.sum(per_example_kl, axis=1))
    return reconstruction_loss + alpha * supervised_loss + kl_loss_z1


if __name__ == "__main__":

    def make_inputs(key, B, DX, DY, DZ, dtype=jnp.float32):
        k1, k2, k3, k4, k5, k6 = jax.random.split(key, 6)
        x_decoded = jax.nn.sigmoid(jax.random.normal(k1, (B, DX))).astype(dtype)
        x = jax.nn.sigmoid(jax.random.normal(k2, (B, DX))).astype(dtype)
        y_decoded = jax.nn.sigmoid(jax.random.normal(k3, (B, DY))).astype(dtype)
        y = jax.random.bernoulli(k4, 0.5, (B, DY)).astype(dtype)
        z1_mu = jax.random.normal(k5, (B, DZ)).astype(dtype)
        z1_logvar = (0.1 * jax.random.normal(k6, (B, DZ))).astype(dtype)
        return x_decoded, x, y_decoded, y, z1_mu, z1_logvar

    # Small canonical shapes from the module (batch=8, x_dim=16, y_dim=1, z_dim=32).
    args_small = make_inputs(jax.random.PRNGKey(0), 8, 16, 1, 32)
    loss = jax.block_until_ready(vfae_loss(*args_small, alpha=1.0))
    ref = vfae_loss_ref(*args_small, alpha=1.0)
    assert jnp.allclose(loss, ref, rtol=1e-4, atol=1e-5), (loss, ref)

    # Ragged batch/feature dims, small tiles -> several grid steps per core,
    # a masked partial tile, and a traced alpha passed through SMEM scales.
    args_big = make_inputs(jax.random.PRNGKey(1), 611, 49, 1, 37)
    loss_big = jax.block_until_ready(
        vfae_loss(*args_big, alpha=jnp.float32(0.7), block_rows=64))
    ref_big = vfae_loss_ref(*args_big, alpha=0.7)
    assert jnp.allclose(loss_big, ref_big, rtol=1e-4, atol=1e-5), (loss_big, ref_big)

    # bf16 activations stream straight into the kernel (half the HBM bytes);
    # odd tile count also exercises the clamped "phantom" core-split tile.
    args_bf16 = make_inputs(jax.random.PRNGKey(2), 257, 40, 1, 24, dtype=jnp.bfloat16)
    loss_bf = jax.block_until_ready(vfae_loss(*args_bf16, alpha=0.5, block_rows=64))
    ref_bf = vfae_loss_ref(*args_bf16, alpha=0.5)
    assert jnp.allclose(loss_bf, ref_bf, rtol=1e-3, atol=1e-3), (loss_bf, ref_bf)

    print("KERNEL_OK")
</pallas_src>

<mosaic_0001>
module attributes {stable_mosaic.version = 11 : i64} {
  func.func @kernel(%arg0: i32, %arg1: i32, %arg2: memref<3xf32, #tpu.memory_space<smem>>, %arg3: memref<8x16xf32, #tpu.memory_space<vmem>>, %arg4: memref<8x16xf32, #tpu.memory_space<vmem>>, %arg5: memref<8x1xf32, #tpu.memory_space<vmem>>, %arg6: memref<8x1xf32, #tpu.memory_space<vmem>>, %arg7: memref<8x32xf32, #tpu.memory_space<vmem>>, %arg8: memref<8x32xf32, #tpu.memory_space<vmem>>, %arg9: memref<1x8x128xf32, #tpu.memory_space<vmem>>, %arg10: memref<1x1xf32, #tpu.memory_space<vmem>>, %arg11: memref<1x1xf32, #tpu.memory_space<vmem>>, %arg12: memref<1x1xf32, #tpu.memory_space<vmem>>) attributes {dimension_semantics = [#tpu.dimension_semantics<parallel>, #tpu.dimension_semantics<arbitrary>], iteration_bounds = array<i64: 2, 1>, scalar_prefetch = 0 : i64, scratch_operands = 3 : i64, tpu.core_type = #tpu.core_type<tc>, window_params = [{transform_indices = @transform_0, window_bounds = array<i64: 3>}, {transform_indices = @transform_1, window_bounds = array<i64: 8, 16>}, {transform_indices = @transform_2, window_bounds = array<i64: 8, 16>}, {pipeline_mode = #tpu.pipeline_mode<synchronous>, transform_indices = @transform_3, window_bounds = array<i64: 8, 1>}, {pipeline_mode = #tpu.pipeline_mode<synchronous>, transform_indices = @transform_4, window_bounds = array<i64: 8, 1>}, {transform_indices = @transform_5, window_bounds = array<i64: 8, 32>}, {transform_indices = @transform_6, window_bounds = array<i64: 8, 32>}, {transform_indices = @transform_7, window_bounds = array<i64: 1, 8, 128>}]} {
    %c0_i32 = arith.constant 0 : i32
    %0 = arith.cmpi eq, %arg1, %c0_i32 : i32
    %1 = arith.extui %0 : i1 to i32
    %c0_i32_0 = arith.constant 0 : i32
    %2 = arith.cmpi ne, %1, %c0_i32_0 : i32
    scf.if %2 {
      %cst_32 = arith.constant 0.000000e+00 : f32
      %74 = vector.broadcast %cst_32 : f32 to vector<1x1xf32>
      %c0_33 = arith.constant 0 : index
      %c0_34 = arith.constant 0 : index
      %75 = vector.load %arg10[%c0_33, %c0_34] : memref<1x1xf32, #tpu.memory_space<vmem>>, vector<1x1xf32>
      tpu.vector_store %arg10[%c0_33, %c0_34], %74 {strides = array<i32>} : memref<1x1xf32, #tpu.memory_space<vmem>>, vector<1x1xf32>,
      %cst_35 = arith.constant 0.000000e+00 : f32
      %76 = vector.broadcast %cst_35 : f32 to vector<1x1xf32>
      %c0_36 = arith.constant 0 : index
      %c0_37 = arith.constant 0 : index
      %77 = vector.load %arg11[%c0_36, %c0_37] : memref<1x1xf32, #tpu.memory_space<vmem>>, vector<1x1xf32>
      tpu.vector_store %arg11[%c0_36, %c0_37], %76 {strides = array<i32>} : memref<1x1xf32, #tpu.memory_space<vmem>>, vector<1x1xf32>,
      %cst_38 = arith.constant 0.000000e+00 : f32
      %78 = vector.broadcast %cst_38 : f32 to vector<1x1xf32>
      %c0_39 = arith.constant 0 : index
      %c0_40 = arith.constant 0 : index
      %79 = vector.load %arg12[%c0_39, %c0_40] : memref<1x1xf32, #tpu.memory_space<vmem>>, vector<1x1xf32>
      tpu.vector_store %arg12[%c0_39, %c0_40], %78 {strides = array<i32>} : memref<1x1xf32, #tpu.memory_space<vmem>>, vector<1x1xf32>,
    } else {
    }
    %c0_i32_1 = arith.constant 0 : i32
    %3 = arith.cmpi eq, %arg1, %c0_i32_1 : i32
    %c0_i32_2 = arith.constant 0 : i32
    %4 = arith.cmpi eq, %arg0, %c0_i32_2 : i32
    %5 = arith.andi %3, %4 : i1
    %6 = arith.extui %5 : i1 to i32
    %c0_i32_3 = arith.constant 0 : i32
    %7 = arith.cmpi ne, %6, %c0_i32_3 : i32
    scf.if %7 {
      %c0_32 = arith.constant 0 : index
      %c0_33 = arith.constant 0 : index
      %74 = vector.load %arg5[%c0_32, %c0_33] : memref<8x1xf32, #tpu.memory_space<vmem>>, vector<8x1xf32>
      %c0_34 = arith.constant 0 : index
      %c0_35 = arith.constant 0 : index
      %75 = vector.load %arg6[%c0_34, %c0_35] : memref<8x1xf32, #tpu.memory_space<vmem>>, vector<8x1xf32>
      %c0_36 = arith.constant 0 : index
      %c0_37 = arith.constant 0 : index
      %76 = vector.load %arg12[%c0_36, %c0_37] : memref<1x1xf32, #tpu.memory_space<vmem>>, vector<1x1xf32>
      %77 = math.log %74 : vector<8x1xf32>
      %cst_38 = arith.constant -1.000000e+02 : f32
      %78 = vector.broadcast %cst_38 : f32 to vector<8x1xf32>
      %79 = arith.maximumf %77, %78 : vector<8x1xf32>
      %cst_39 = arith.constant 1.000000e+00 : f32
      %80 = vector.broadcast %cst_39 : f32 to vector<8x1xf32>
      %81 = arith.subf %80, %74 : vector<8x1xf32>
      %82 = math.log %81 : vector<8x1xf32>
      %cst_40 = arith.constant -1.000000e+02 : f32
      %83 = vector.broadcast %cst_40 : f32 to vector<8x1xf32>
      %84 = arith.maximumf %82, %83 : vector<8x1xf32>
      %85 = arith.subf %79, %84 : vector<8x1xf32>
      %86 = arith.mulf %75, %85 : vector<8x1xf32>
      %87 = arith.addf %86, %84 : vector<8x1xf32>
      %cst_41 = arith.constant 0.000000e+00 : f32
      %88 = vector.broadcast %cst_41 : f32 to vector<8x1xf32>
      %89 = arith.subf %88, %87 : vector<8x1xf32>
      %90 = vector.shape_cast %89 : vector<8x1xf32> to vector<1x8x1xf32>
      %cst_42 = arith.constant dense<0.000000e+00> : vector<1xf32>
      %91 = vector.multi_reduction <add>, %90, %cst_42 [1, 2] : vector<1x8x1xf32> to vector<1xf32>
      %92 = vector.shape_cast %91 : vector<1xf32> to vector<1x1x1xf32>
      %93 = vector.extract %92[0, 0, 0] : f32 from vector<1x1x1xf32>
      %94 = vector.broadcast %93 : f32 to vector<1x1xf32>
      %95 = arith.addf %76, %94 : vector<1x1xf32>
      %c0_43 = arith.constant 0 : index
      %c0_44 = arith.constant 0 : index
      %96 = vector.load %arg12[%c0_43, %c0_44] : memref<1x1xf32, #tpu.memory_space<vmem>>, vector<1x1xf32>
      tpu.vector_store %arg12[%c0_43, %c0_44], %95 {strides = array<i32>} : memref<1x1xf32, #tpu.memory_space<vmem>>, vector<1x1xf32>,
    } else {
    }
    %c1_i32 = arith.constant 1 : i32
    %8 = arith.muli %arg0, %c1_i32 : i32
    %9 = arith.addi %8, %arg1 : i32
    %c8_i32 = arith.constant 8 : i32
    %10 = arith.muli %9, %c8_i32 : i32
    %11 = tpu.iota {dimensions = array<i32: 0>} : vector<8x1xi32>
    %12 = vector.broadcast %10 : i32 to vector<8x1xi32>
    %13 = arith.addi %12, %11 : vector<8x1xi32>
    %c8_i32_4 = arith.constant 8 : i32
    %14 = vector.broadcast %c8_i32_4 : i32 to vector<8x1xi32>
    %15 = arith.cmpi slt, %13, %14 : vector<8x1xi32>
    %c0 = arith.constant 0 : index
    %c0_5 = arith.constant 0 : index
    %16 = vector.load %arg3[%c0, %c0_5] : memref<8x16xf32, #tpu.memory_space<vmem>>, vector<8x16xf32>
    %cst = arith.constant 1.000000e+00 : f32
    %17 = vector.shape_cast %15 : vector<8x1xi1> to vector<8x1xi1>
    %18 = vector.broadcast %17 : vector<8x1xi1> to vector<8x16xi1>
    %19 = vector.broadcast %cst : f32 to vector<8x16xf32>
    %20 = arith.select %18, %16, %19 : vector<8x16xi1>, vector<8x16xf32>
    %c0_6 = arith.constant 0 : index
    %c0_7 = arith.constant 0 : index
    %21 = vector.load %arg4[%c0_6, %c0_7] : memref<8x16xf32, #tpu.memory_space<vmem>>, vector<8x16xf32>
    %cst_8 = arith.constant 1.000000e+00 : f32
    %22 = vector.shape_cast %15 : vector<8x1xi1> to vector<8x1xi1>
    %23 = vector.broadcast %22 : vector<8x1xi1> to vector<8x16xi1>
    %24 = vector.broadcast %cst_8 : f32 to vector<8x16xf32>
    %25 = arith.select %23, %21, %24 : vector<8x16xi1>, vector<8x16xf32>
    %c0_9 = arith.constant 0 : index
    %c0_10 = arith.constant 0 : index
    %26 = vector.load %arg10[%c0_9, %c0_10] : memref<1x1xf32, #tpu.memory_space<vmem>>, vector<1x1xf32>
    %27 = math.log %20 : vector<8x16xf32>
    %cst_11 = arith.constant -1.000000e+02 : f32
    %28 = vector.broadcast %cst_11 : f32 to vector<8x16xf32>
    %29 = arith.maximumf %27, %28 : vector<8x16xf32>
    %cst_12 = arith.constant 1.000000e+00 : f32
    %30 = vector.broadcast %cst_12 : f32 to vector<8x16xf32>
    %31 = arith.subf %30, %20 : vector<8x16xf32>
    %32 = math.log %31 : vector<8x16xf32>
    %cst_13 = arith.constant -1.000000e+02 : f32
    %33 = vector.broadcast %cst_13 : f32 to vector<8x16xf32>
    %34 = arith.maximumf %32, %33 : vector<8x16xf32>
    %35 = arith.subf %29, %34 : vector<8x16xf32>
    %36 = arith.mulf %25, %35 : vector<8x16xf32>
    %37 = arith.addf %36, %34 : vector<8x16xf32>
    %cst_14 = arith.constant 0.000000e+00 : f32
    %38 = vector.broadcast %cst_14 : f32 to vector<8x16xf32>
    %39 = arith.subf %38, %37 : vector<8x16xf32>
    %40 = vector.shape_cast %39 : vector<8x16xf32> to vector<1x8x16xf32>
    %cst_15 = arith.constant dense<0.000000e+00> : vector<1xf32>
    %41 = vector.multi_reduction <add>, %40, %cst_15 [1, 2] : vector<1x8x16xf32> to vector<1xf32>
    %42 = vector.shape_cast %41 : vector<1xf32> to vector<1x1x1xf32>
    %43 = vector.extract %42[0, 0, 0] : f32 from vector<1x1x1xf32>
    %44 = vector.broadcast %43 : f32 to vector<1x1xf32>
    %45 = arith.addf %26, %44 : vector<1x1xf32>
    %c0_16 = arith.constant 0 : index
    %c0_17 = arith.constant 0 : index
    %46 = vector.load %arg10[%c0_16, %c0_17] : memref<1x1xf32, #tpu.memory_space<vmem>>, vector<1x1xf32>
    tpu.vector_store %arg10[%c0_16, %c0_17], %45 {strides = array<i32>} : memref<1x1xf32, #tpu.memory_space<vmem>>, vector<1x1xf32>,
    %c0_18 = arith.constant 0 : index
    %c0_19 = arith.constant 0 : index
    %47 = vector.load %arg7[%c0_18, %c0_19] : memref<8x32xf32, #tpu.memory_space<vmem>>, vector<8x32xf32>
    %cst_20 = arith.constant 0.000000e+00 : f32
    %48 = vector.shape_cast %15 : vector<8x1xi1> to vector<8x1xi1>
    %49 = vector.broadcast %48 : vector<8x1xi1> to vector<8x32xi1>
    %50 = vector.broadcast %cst_20 : f32 to vector<8x32xf32>
    %51 = arith.select %49, %47, %50 : vector<8x32xi1>, vector<8x32xf32>
    %c0_21 = arith.constant 0 : index
    %c0_22 = arith.constant 0 : index
    %52 = vector.load %arg8[%c0_21, %c0_22] : memref<8x32xf32, #tpu.memory_space<vmem>>, vector<8x32xf32>
    %cst_23 = arith.constant 0.000000e+00 : f32
    %53 = vector.shape_cast %15 : vector<8x1xi1> to vector<8x1xi1>
    %54 = vector.broadcast %53 : vector<8x1xi1> to vector<8x32xi1>
    %55 = vector.broadcast %cst_23 : f32 to vector<8x32xf32>
    %56 = arith.select %54, %52, %55 : vector<8x32xi1>, vector<8x32xf32>
    %c0_24 = arith.constant 0 : index
    %c0_25 = arith.constant 0 : index
    %57 = vector.load %arg11[%c0_24, %c0_25] : memref<1x1xf32, #tpu.memory_space<vmem>>, vector<1x1xf32>
    %58 = math.exp %56 : vector<8x32xf32>
    %59 = arith.subf %58, %56 : vector<8x32xf32>
    %cst_26 = arith.constant 1.000000e+00 : f32
    %60 = vector.broadcast %cst_26 : f32 to vector<8x32xf32>
    %61 = arith.subf %59, %60 : vector<8x32xf32>
    %62 = arith.mulf %51, %51 : vector<8x32xf32>
    %63 = arith.addf %61, %62 : vector<8x32xf32>
    %64 = vector.shape_cast %63 : vector<8x32xf32> to vector<1x8x32xf32>
    %cst_27 = arith.constant dense<0.000000e+00> : vector<1xf32>
    %65 = vector.multi_reduction <add>, %64, %cst_27 [1, 2] : vector<1x8x32xf32> to vector<1xf32>
    %66 = vector.shape_cast %65 : vector<1xf32> to vector<1x1x1xf32>
    %67 = vector.extract %66[0, 0, 0] : f32 from vector<1x1x1xf32>
    %68 = vector.broadcast %67 : f32 to vector<1x1xf32>
    %69 = arith.addf %57, %68 : vector<1x1xf32>
    %c0_28 = arith.constant 0 : index
    %c0_29 = arith.constant 0 : index
    %70 = vector.load %arg11[%c0_28, %c0_29] : memref<1x1xf32, #tpu.memory_space<vmem>>, vector<1x1xf32>
    tpu.vector_store %arg11[%c0_28, %c0_29], %69 {strides = array<i32>} : memref<1x1xf32, #tpu.memory_space<vmem>>, vector<1x1xf32>,
    %c0_i32_30 = arith.constant 0 : i32
    %71 = arith.cmpi eq, %arg1, %c0_i32_30 : i32
    %72 = arith.extui %71 : i1 to i32
    %c0_i32_31 = arith.constant 0 : i32
    %73 = arith.cmpi ne, %72, %c0_i32_31 : i32
    scf.if %73 {
      %c0_32 = arith.constant 0 : index
      %c0_33 = arith.constant 0 : index
      %74 = vector.load %arg10[%c0_32, %c0_33] : memref<1x1xf32, #tpu.memory_space<vmem>>, vector<1x1xf32>
      %c0_34 = arith.constant 0 : index
      %75 = memref.load %arg2[%c0_34] : memref<3xf32, #tpu.memory_space<smem>>
      %76 = vector.broadcast %75 : f32 to vector<1x1xf32>
      %77 = arith.mulf %74, %76 : vector<1x1xf32>
      %c0_35 = arith.constant 0 : index
      %c0_36 = arith.constant 0 : index
      %78 = vector.load %arg12[%c0_35, %c0_36] : memref<1x1xf32, #tpu.memory_space<vmem>>, vector<1x1xf32>
      %c1 = arith.constant 1 : index
      %79 = memref.load %arg2[%c1] : memref<3xf32, #tpu.memory_space<smem>>
      %80 = vector.broadcast %79 : f32 to vector<1x1xf32>
      %81 = arith.mulf %78, %80 : vector<1x1xf32>
      %82 = arith.addf %77, %81 : vector<1x1xf32>
      %c0_37 = arith.constant 0 : index
      %c0_38 = arith.constant 0 : index
      %83 = vector.load %arg11[%c0_37, %c0_38] : memref<1x1xf32, #tpu.memory_space<vmem>>, vector<1x1xf32>
      %c2 = arith.constant 2 : index
      %84 = memref.load %arg2[%c2] : memref<3xf32, #tpu.memory_space<smem>>
      %85 = vector.broadcast %84 : f32 to vector<1x1xf32>
      %86 = arith.mulf %83, %85 : vector<1x1xf32>
      %87 = arith.addf %82, %86 : vector<1x1xf32>
      %88 = vector.shape_cast %87 : vector<1x1xf32> to vector<1x1x1xf32>
      %89 = vector.broadcast %88 : vector<1x1x1xf32> to vector<1x8x128xf32>
      %c0_39 = arith.constant 0 : index
      %c0_40 = arith.constant 0 : index
      %c0_41 = arith.constant 0 : index
      %90 = vector.load %arg9[%c0_39, %c0_40, %c0_41] : memref<1x8x128xf32, #tpu.memory_space<vmem>>, vector<1x8x128xf32>
      tpu.vector_store %arg9[%c0_39, %c0_40, %c0_41], %89 {strides = array<i32>} : memref<1x8x128xf32, #tpu.memory_space<vmem>>, vector<1x8x128xf32>,
    } else {
    }
    return
  }
  func.func @transform_0(%arg0: i32, %arg1: i32) -> i32 {
    %c0_i32 = arith.constant 0 : i32
    %c0_i32_0 = arith.constant 0 : i32
    return %c0_i32 : i32
  }
  func.func @transform_1(%arg0: i32, %arg1: i32) -> (i32, i32) {
    %c1_i32 = arith.constant 1 : i32
    %0 = arith.muli %arg0, %c1_i32 : i32
    %1 = arith.addi %0, %arg1 : i32
    %c0_i32 = arith.constant 0 : i32
    %2 = arith.minsi %1, %c0_i32 : i32
    %c0_i32_0 = arith.constant 0 : i32
    %c0_i32_1 = arith.constant 0 : i32
    return %2, %c0_i32_0 : i32, i32
  }
  func.func @transform_2(%arg0: i32, %arg1: i32) -> (i32, i32) {
    %c1_i32 = arith.constant 1 : i32
    %0 = arith.muli %arg0, %c1_i32 : i32
    %1 = arith.addi %0, %arg1 : i32
    %c0_i32 = arith.constant 0 : i32
    %2 = arith.minsi %1, %c0_i32 : i32
    %c0_i32_0 = arith.constant 0 : i32
    %c0_i32_1 = arith.constant 0 : i32
    return %2, %c0_i32_0 : i32, i32
  }
  func.func @transform_3(%arg0: i32, %arg1: i32) -> (i32, i32) {
    %c0_i32 = arith.constant 0 : i32
    %c0_i32_0 = arith.constant 0 : i32
    %c0_i32_1 = arith.constant 0 : i32
    return %c0_i32, %c0_i32_0 : i32, i32
  }
  func.func @transform_4(%arg0: i32, %arg1: i32) -> (i32, i32) {
    %c0_i32 = arith.constant 0 : i32
    %c0_i32_0 = arith.constant 0 : i32
    %c0_i32_1 = arith.constant 0 : i32
    return %c0_i32, %c0_i32_0 : i32, i32
  }
  func.func @transform_5(%arg0: i32, %arg1: i32) -> (i32, i32) {
    %c1_i32 = arith.constant 1 : i32
    %0 = arith.muli %arg0, %c1_i32 : i32
    %1 = arith.addi %0, %arg1 : i32
    %c0_i32 = arith.constant 0 : i32
    %2 = arith.minsi %1, %c0_i32 : i32
    %c0_i32_0 = arith.constant 0 : i32
    %c0_i32_1 = arith.constant 0 : i32
    return %2, %c0_i32_0 : i32, i32
  }
  func.func @transform_6(%arg0: i32, %arg1: i32) -> (i32, i32) {
    %c1_i32 = arith.constant 1 : i32
    %0 = arith.muli %arg0, %c1_i32 : i32
    %1 = arith.addi %0, %arg1 : i32
    %c0_i32 = arith.constant 0 : i32
    %2 = arith.minsi %1, %c0_i32 : i32
    %c0_i32_0 = arith.constant 0 : i32
    %c0_i32_1 = arith.constant 0 : i32
    return %2, %c0_i32_0 : i32, i32
  }
  func.func @transform_7(%arg0: i32, %arg1: i32) -> (i32, i32, i32) {
    %c0_i32 = arith.constant 0 : i32
    %c0_i32_0 = arith.constant 0 : i32
    %c0_i32_1 = arith.constant 0 : i32
    return %arg0, %c0_i32, %c0_i32_0 : i32, i32, i32
  }
}

</mosaic_0001>

<llo_original>
// kernel: tpu_custom_call.1
$region0: #{tpu_custom_call.1}
  #allocation0 [shape = 'u32[]', space=smem, size = 0x4, offset = 0x4, fixed_abs, tag = 'smem constant byte address 0x4 - core index']
  #allocation1 [shape = 'u32[72,128]{1,0:T(1,128)}', space=vmem, size = 0x9000, scoped, tag = 'internal scratch']
  #allocation2 [shape = 'f32[1,1]{1,0:T(1,128)}', space=vmem, size = 0x200, scoped, tag = 'scratch operand']
  #allocation3 [shape = 'f32[1,1]{1,0:T(1,128)}', space=vmem, size = 0x200, scoped, tag = 'scratch operand']
  #allocation4 [shape = 'f32[1,1]{1,0:T(1,128)}', space=vmem, size = 0x200, scoped, tag = 'scratch operand']
  %s0 = inlined_call_operand.vmem [shape: f32[3], index: 0, kind: input, shape index: {}]
  %s1 = inlined_call_operand.vmem [shape: f32[8,16], index: 1, kind: input, shape index: {}]
  %s2 = inlined_call_operand.vmem [shape: f32[8,16], index: 2, kind: input, shape index: {}]
  %s3 = inlined_call_operand.vmem [shape: f32[8,1], index: 3, kind: input, shape index: {}]
  %s4 = inlined_call_operand.vmem [shape: f32[8,1], index: 4, kind: input, shape index: {}]
  %s5 = inlined_call_operand.hbm [shape: f32[8,32], index: 5, kind: input, shape index: {}]
  %s6 = inlined_call_operand.hbm [shape: f32[8,32], index: 6, kind: input, shape index: {}]
  %s7 = inlined_call_operand.hbm [shape: f32[2,8,128], index: 7, kind: output, shape index: {}]
  %s8 = sld [smem:[#allocation0]]
  $region85: #{tpu_custom_call.1} parent=0
    _
  %s10 = ssub.s32 1, %s8
  %s11 = scalar_select 0, %s10, %s8
  $region1: #{tpu_custom_call.1} parent=0
    #allocation5 [shape = 'u8[512]{0}', space=smem, size = 0x200, scoped, tag = 'input window, operand 0, single buffered']
    #allocation6 [shape = 's32[2]{0}', space=sflag, size = 0x8, scoped, tag = 'scoped memory for tpu_custom_call.1']
    #allocation7 [shape = 's32[2]{0}', space=sflag, size = 0x8, scoped, tag = 'scoped memory for tpu_custom_call.1']
    #allocation8 [shape = 's32[2]{0}', space=sflag, size = 0x8, scoped, tag = 'scoped memory for tpu_custom_call.1']
    #allocation9 [shape = 'u8[8192]{0}', space=vmem, size = 0x2000, scoped, tag = 'input window, operand 5']
    #allocation10 [shape = 'u8[8192]{0}', space=vmem, size = 0x2000, scoped, tag = 'input window, operand 6']
    #allocation11 [shape = 's32[2]{0}', space=sflag, size = 0x8, scoped, tag = 'scoped memory for tpu_custom_call.1']
    #allocation12 [shape = 'u8[8192]{0}', space=vmem, size = 0x2000, scoped, tag = 'output window, operand 0']
    %12 = vsyncpa [#allocation8], 0
    %13 = vsyncpa [#allocation6], 0
    %s14 = scalar_lea.sflag [#allocation6], 1
    %15 = vsyncpa %s14, 0
    %16 = vsyncpa [#allocation11], 0
    %s17 = scalar_lea.sflag [#allocation11], 1
    %18 = vsyncpa %s17, 0
    %19 = vsyncpa [#allocation7], 0
    %s20 = scalar_lea.sflag [#allocation7], 1
    %21 = vsyncpa %s20, 0
    loop: start=0, step=1, limit=4
    $region2: #{tpu_custom_call.1} parent=1 // loop_pre_header
      _
    $region3: #{tpu_custom_call.1} parent=1 // loop_header
      %s23 = sphi 0, %s27
      %p24 = scmp.ge.s32.totalorder %s23, 4
      %s30 = sphi 0, %s42
      %s31 = sphi 0, %s38
      %s32 = sphi 0, %s30
      %s33 = sphi 0, %s31
      %s34 = sphi 0, %s32
      %s35 = sphi 0, %s33
      %s43 = sphi 0, %s43
      %s45 = sphi 0, %s43
      %s46 = sphi 0, %s45
      %s60 = sphi 0, %s46
      %s72 = sphi 0, %s74
      %s75 = sphi 0, %s72
      %s76 = sphi 0, %s75
      %s92 = sphi 0, %s76
      %s104 = sphi 0, %s106
      %s107 = sphi 0, %s104
      %s108 = sphi 0, %s107
      %s124 = sphi 0, %s108
      %s128 = sphi 0, %s128
      %s130 = sphi 0, %s128
      %s131 = sphi 0, %s130
      %s145 = sphi 0, %s131
      %s149 = sphi 0, %s149
      %s151 = sphi 0, %s149
      %s152 = sphi 0, %s151
      %s166 = sphi 0, %s152
      %s178 = sphi 0, %s180
      %s181 = sphi 0, %s178
      %s182 = sphi 0, %s181
      %s198 = sphi 0, %s182
      %s210 = sphi 0, %s212
      %s213 = sphi 0, %s210
      %s214 = sphi 0, %s213
      %s230 = sphi 0, %s214
      %s236 = sphi 0, %s238
      %s239 = sphi 0, %s236
      %s240 = sphi 0, %s239
      %s256 = sphi 0, %s240
    $region4: #{tpu_custom_call.1} parent=1 // loop_header_branch
      %26 = sbr.rel (%p24) target = $region8
    $region5: #{tpu_custom_call.1} parent=1 // loop_body
      %s28 = ssub.s32 %s23, 1
      %s29 = ssub.s32 %s23, 2
      %s36 = sadd.s32 1, %s31
      %p37 = scmp.ge.s32.totalorder %s36, 1
      %s38 = scalar_select %p37, 0, %s36
      %s39 = sadd.s32 1, %s30
      %s40 = scalar_select %p37, %s39, %s30
      %p41 = scmp.ge.s32.totalorder %s40, 2
      %s42 = scalar_select %p41, 0, %s40
      %s44 = sadd.s32 %s43, 1
      %p47 = scmp.eq.s32.totalorder %s23, 1
      %p48 = scmp.ne.s32.totalorder %s43, %s45
      %p49 = scmp.eq.s32.totalorder %s23, 0
      %p50 = por %p48, %p49
      %p51 = scmp.ne.s32.totalorder %s43, %s45
      %p52 = scmp.eq.s32.totalorder %s28, 1
      %p53 = por %p51, %p52
      %p54 = scmp.ne.s32.totalorder %s45, %s46
      %p55 = scmp.eq.s32.totalorder %s28, 0
      %p56 = por %p54, %p55
      %p57 = scmp.ne.s32.totalorder %s45, %s46
      %p58 = scmp.eq.s32.totalorder %s29, 1
      %p59 = por %p57, %p58
      %p61 = scmp.ne.s32.totalorder %s46, %s60
      %p62 = scmp.eq.s32.totalorder %s29, 0
      %p63 = por %p61, %p62
      %s64 = sadd.s32 %s30, %s31
      %p65 = scmp.lt.s32.totalorder %s64, 0
      %s66 = scalar_select %p65, %s64, 0
      %s67 = sadd.s32 %s42, %s38
      %p68 = scmp.lt.s32.totalorder %s67, 0
      %s69 = scalar_select %p68, %s67, 0
      %s70 = ssub.s32 %s66, %s69
      %p71 = scmp.eq.s32.totalorder %s70, 0
      %s73 = sadd.s32 %s72, 1
      %s74 = scalar_select %p71, %s72, %s73
      %p77 = pneg %p71
      %p78 = scmp.eq.s32.totalorder %s23, 1
      %p79 = por %p77, %p78
      %p80 = scmp.ne.s32.totalorder %s72, %s75
      %p81 = scmp.eq.s32.totalorder %s23, 0
      %p82 = por %p80, %p81
      %p83 = scmp.ne.s32.totalorder %s72, %s75
      %p84 = scmp.eq.s32.totalorder %s28, 1
      %p85 = por %p83, %p84
      %p86 = scmp.ne.s32.totalorder %s75, %s76
      %p87 = scmp.eq.s32.totalorder %s28, 0
      %p88 = por %p86, %p87
      %p89 = scmp.ne.s32.totalorder %s75, %s76
      %p90 = scmp.eq.s32.totalorder %s29, 1
      %p91 = por %p89, %p90
      %p93 = scmp.ne.s32.totalorder %s76, %s92
      %p94 = scmp.eq.s32.totalorder %s29, 0
      %p95 = por %p93, %p94
      %s96 = sadd.s32 %s30, %s31
      %p97 = scmp.lt.s32.totalorder %s96, 0
      %s98 = scalar_select %p97, %s96, 0
      %s99 = sadd.s32 %s42, %s38
      %p100 = scmp.lt.s32.totalorder %s99, 0
      %s101 = scalar_select %p100, %s99, 0
      %s102 = ssub.s32 %s98, %s101
      %p103 = scmp.eq.s32.totalorder %s102, 0
      %s105 = sadd.s32 %s104, 1
      %s106 = scalar_select %p103, %s104, %s105
      %p109 = pneg %p103
      %p110 = scmp.eq.s32.totalorder %s23, 1
      %p111 = por %p109, %p110
      %p112 = scmp.ne.s32.totalorder %s104, %s107
      %p113 = scmp.eq.s32.totalorder %s23, 0
      %p114 = por %p112, %p113
      %p115 = scmp.ne.s32.totalorder %s104, %s107
      %p116 = scmp.eq.s32.totalorder %s28, 1
      %p117 = por %p115, %p116
      %p118 = scmp.ne.s32.totalorder %s107, %s108
      %p119 = scmp.eq.s32.totalorder %s28, 0
      %p120 = por %p118, %p119
      %p121 = scmp.ne.s32.totalorder %s107, %s108
      %p122 = scmp.eq.s32.totalorder %s29, 1
      %p123 = por %p121, %p122
      %p125 = scmp.ne.s32.totalorder %s108, %s124
      %p126 = scmp.eq.s32.totalorder %s29, 0
      %p127 = por %p125, %p126
      %s129 = sadd.s32 %s128, 1
      %p132 = scmp.eq.s32.totalorder %s23, 1
      %p133 = scmp.ne.s32.totalorder %s128, %s130
      %p134 = scmp.eq.s32.totalorder %s23, 0
      %p135 = por %p133, %p134
      %p136 = scmp.ne.s32.totalorder %s128, %s130
      %p137 = scmp.eq.s32.totalorder %s28, 1
      %p138 = por %p136, %p137
      %p139 = scmp.ne.s32.totalorder %s130, %s131
      %p140 = scmp.eq.s32.totalorder %s28, 0
      %p141 = por %p139, %p140
      %p142 = scmp.ne.s32.totalorder %s130, %s131
      %p143 = scmp.eq.s32.totalorder %s29, 1
      %p144 = por %p142, %p143
      %p146 = scmp.ne.s32.totalorder %s131, %s145
      %p147 = scmp.eq.s32.totalorder %s29, 0
      %p148 = por %p146, %p147
      %s150 = sadd.s32 %s149, 1
      %p153 = scmp.eq.s32.totalorder %s23, 1
      %p154 = scmp.ne.s32.totalorder %s149, %s151
      %p155 = scmp.eq.s32.totalorder %s23, 0
      %p156 = por %p154, %p155
      %p157 = scmp.ne.s32.totalorder %s149, %s151
      %p158 = scmp.eq.s32.totalorder %s28, 1
      %p159 = por %p157, %p158
      %p160 = scmp.ne.s32.totalorder %s151, %s152
      %p161 = scmp.eq.s32.totalorder %s28, 0
      %p162 = por %p160, %p161
      %p163 = scmp.ne.s32.totalorder %s151, %s152
      %p164 = scmp.eq.s32.totalorder %s29, 1
      %p165 = por %p163, %p164
      %p167 = scmp.ne.s32.totalorder %s152, %s166
      %p168 = scmp.eq.s32.totalorder %s29, 0
      %p169 = por %p167, %p168
      %s170 = sadd.s32 %s30, %s31
      %p171 = scmp.lt.s32.totalorder %s170, 0
      %s172 = scalar_select %p171, %s170, 0
      %s173 = sadd.s32 %s42, %s38
      %p174 = scmp.lt.s32.totalorder %s173, 0
      %s175 = scalar_select %p174, %s173, 0
      %s176 = ssub.s32 %s172, %s175
      %p177 = scmp.eq.s32.totalorder %s176, 0
      %s179 = sadd.s32 %s178, 1
      %s180 = scalar_select %p177, %s178, %s179
      %p183 = pneg %p177
      %p184 = scmp.eq.s32.totalorder %s23, 1
      %p185 = por %p183, %p184
      %p186 = scmp.ne.s32.totalorder %s178, %s181
      %p187 = scmp.eq.s32.totalorder %s23, 0
      %p188 = por %p186, %p187
      %p189 = scmp.ne.s32.totalorder %s178, %s181
      %p190 = scmp.eq.s32.totalorder %s28, 1
      %p191 = por %p189, %p190
      %p192 = scmp.ne.s32.totalorder %s181, %s182
      %p193 = scmp.eq.s32.totalorder %s28, 0
      %p194 = por %p192, %p193
      %p195 = scmp.ne.s32.totalorder %s181, %s182
      %p196 = scmp.eq.s32.totalorder %s29, 1
      %p197 = por %p195, %p196
      %p199 = scmp.ne.s32.totalorder %s182, %s198
      %p200 = scmp.eq.s32.totalorder %s29, 0
      %p201 = por %p199, %p200
      %s202 = sadd.s32 %s30, %s31
      %p203 = scmp.lt.s32.totalorder %s202, 0
      %s204 = scalar_select %p203, %s202, 0
      %s205 = sadd.s32 %s42, %s38
      %p206 = scmp.lt.s32.totalorder %s205, 0
      %s207 = scalar_select %p206, %s205, 0
      %s208 = ssub.s32 %s204, %s207
      %p209 = scmp.eq.s32.totalorder %s208, 0
      %s211 = sadd.s32 %s210, 1
      %s212 = scalar_select %p209, %s210, %s211
      %p215 = pneg %p209
      %p216 = scmp.eq.s32.totalorder %s23, 1
      %p217 = por %p215, %p216
      %p218 = scmp.ne.s32.totalorder %s210, %s213
      %p219 = scmp.eq.s32.totalorder %s23, 0
      %p220 = por %p218, %p219
      %p221 = scmp.ne.s32.totalorder %s210, %s213
      %p222 = scmp.eq.s32.totalorder %s28, 1
      %p223 = por %p221, %p222
      %p224 = scmp.ne.s32.totalorder %s213, %s214
      %p225 = scmp.eq.s32.totalorder %s28, 0
      %p226 = por %p224, %p225
      %p227 = scmp.ne.s32.totalorder %s213, %s214
      %p228 = scmp.eq.s32.totalorder %s29, 1
      %p229 = por %p227, %p228
      %p231 = scmp.ne.s32.totalorder %s214, %s230
      %p232 = scmp.eq.s32.totalorder %s29, 0
      %p233 = por %p231, %p232
      %s234 = ssub.s32 %s30, %s42
      %p235 = scmp.eq.s32.totalorder %s234, 0
      %s237 = sadd.s32 %s236, 1
      %s238 = scalar_select %p235, %s236, %s237
      %p241 = pneg %p235
      %p242 = scmp.eq.s32.totalorder %s23, 1
      %p243 = por %p241, %p242
      %p244 = scmp.ne.s32.totalorder %s236, %s239
      %p245 = scmp.eq.s32.totalorder %s23, 0
      %p246 = por %p244, %p245
      %p247 = scmp.ne.s32.totalorder %s236, %s239
      %p248 = scmp.eq.s32.totalorder %s28, 1
      %p249 = por %p247, %p248
      %p250 = scmp.ne.s32.totalorder %s239, %s240
      %p251 = scmp.eq.s32.totalorder %s28, 0
      %p252 = por %p250, %p251
      %p253 = scmp.ne.s32.totalorder %s239, %s240
      %p254 = scmp.eq.s32.totalorder %s29, 1
      %p255 = por %p253, %p254
      %p257 = scmp.ne.s32.totalorder %s240, %s256
      %p258 = scmp.eq.s32.totalorder %s29, 0
      %p259 = por %p257, %p258
      %p260 = scmp.le.s32.totalorder 1, %s23
      %p261 = scmp.lt.s32.totalorder %s23, 3
      %p262 = pnand %p260, %p261
      %p263 = pneg %p262
      // Predicated region
      $region9: #{tpu_custom_call.1} parent=5 // pred_check
        _
      $region10: #{tpu_custom_call.1} parent=5 // pred_check_branch
        %265 = sbr.rel (%p262) target = $region12
      $region11: #{tpu_custom_call.1} parent=5 // pred_region
        %s266 = ssub.s32 %s23, 1
        // Predicated region
        $region13: #{tpu_custom_call.1} parent=11 // pred_check
          %p267 = pneg %p56
        $region14: #{tpu_custom_call.1} parent=11 // pred_check_branch
          %269 = sbr.rel (%p267) target = $region16
        $region15: #{tpu_custom_call.1} parent=11 // pred_region
          %271 = vsyncadd [#allocation8], 0
          %s273 = sshll.u32 %s0, 4
          %s274 = int_to_ptr.vmem [resolvable:$true] %s273
          %276 = dma.vmem_to_smem %s274, 16, [#allocation5], [#allocation8]
        $region16: #{tpu_custom_call.1} parent=11 // pred_fallthru
          _
        // Predicated region
        $region17: #{tpu_custom_call.1} parent=11 // pred_check
          %p277 = pneg %p141
        $region18: #{tpu_custom_call.1} parent=11 // pred_check_branch
          %279 = sbr.rel (%p277) target = $region20
        $region19: #{tpu_custom_call.1} parent=11 // pred_region
          _
        $region20: #{tpu_custom_call.1} parent=11 // pred_fallthru
          _
        // Predicated region
        $region21: #{tpu_custom_call.1} parent=11 // pred_check
          %p280 = pneg %p162
        $region22: #{tpu_custom_call.1} parent=11 // pred_check_branch
          %282 = sbr.rel (%p280) target = $region24
        $region23: #{tpu_custom_call.1} parent=11 // pred_region
          _
        $region24: #{tpu_custom_call.1} parent=11 // pred_fallthru
          _
      $region12: #{tpu_custom_call.1} parent=5 // pred_fallthru
        _
      %p283 = scmp.lt.s32.totalorder %s23, 2
      // Predicated region
      $region25: #{tpu_custom_call.1} parent=5 // pred_check
        %p284 = pneg %p283
      $region26: #{tpu_custom_call.1} parent=5 // pred_check_branch
        %286 = sbr.rel (%p284) target = $region28
      $region27: #{tpu_custom_call.1} parent=5 // pred_region
        // Predicated region
        $region29: #{tpu_custom_call.1} parent=27 // pred_check
          %p287 = pneg %p82
        $region30: #{tpu_custom_call.1} parent=27 // pred_check_branch
          %289 = sbr.rel (%p287) target = $region32
        $region31: #{tpu_custom_call.1} parent=27 // pred_region
          %s290 = sadd.s32 %s30, %s31
          %p291 = scmp.lt.s32.totalorder %s290, 0
          %s292 = scalar_select %p291, %s290, 0
          %p293 = scmp.lt.s32.totalorder %s292, 0
          %s294 = scalar_select %p293, %s292, 0
          %s295 = smul.addr %s294, 8
          %s296 = scalar_lea.vmem %s1, %s295
          %s297 = sadd.s32 %s30, %s31
          %p298 = scmp.lt.s32.totalorder %s297, 0
          %s299 = scalar_select %p298, %s297, 0
        $region32: #{tpu_custom_call.1} parent=27 // pred_fallthru
          _
        // Predicated region
        $region33: #{tpu_custom_call.1} parent=27 // pred_check
          %p300 = pneg %p114
        $region34: #{tpu_custom_call.1} parent=27 // pred_check_branch
          %302 = sbr.rel (%p300) target = $region36
        $region35: #{tpu_custom_call.1} parent=27 // pred_region
          %s303 = sadd.s32 %s30, %s31
          %p304 = scmp.lt.s32.totalorder %s303, 0
          %s305 = scalar_select %p304, %s303, 0
          %p306 = scmp.lt.s32.totalorder %s305, 0
          %s307 = scalar_select %p306, %s305, 0
          %s308 = smul.addr %s307, 8
          %s309 = scalar_lea.vmem %s2, %s308
          %s310 = sadd.s32 %s30, %s31
          %p311 = scmp.lt.s32.totalorder %s310, 0
          %s312 = scalar_select %p311, %s310, 0
        $region36: #{tpu_custom_call.1} parent=27 // pred_fallthru
          _
        // Predicated region
        $region37: #{tpu_custom_call.1} parent=27 // pred_check
          %p313 = pneg %p188
        $region38: #{tpu_custom_call.1} parent=27 // pred_check_branch
          %315 = sbr.rel (%p313) target = $region40
        $region39: #{tpu_custom_call.1} parent=27 // pred_region
          %s316 = sand.u32 %s178, 1
          %s317 = scalar_lea.sflag [#allocation6], %s316
          %s318 = sand.u32 %s178, 1
          %s319 = smul.addr %s318, 8
          %s320 = scalar_lea.vmem [#allocation9], %s319
          %s321 = sadd.s32 %s30, %s31
          %p322 = scmp.lt.s32.totalorder %s321, 0
          %s323 = scalar_select %p322, %s321, 0
          %325 = vsyncadd %s317, 0
          %s326 = smul.addr %s323, 8
          %s327 = scalar_lea.hbm %s5, %s326
          %s329 = sshll.u32 %s327, 4
          %s330 = int_to_ptr.hbm [resolvable:$true] %s329
          %s331 = sshll.u32 %s320, 4
          %s332 = int_to_ptr.vmem [resolvable:$true] %s331
          %334 = dma.hbm_to_vmem [thread:$0]  %s330, 128, %s332, %s317
        $region40: #{tpu_custom_call.1} parent=27 // pred_fallthru
          _
        // Predicated region
        $region41: #{tpu_custom_call.1} parent=27 // pred_check
          %p335 = pneg %p220
        $region42: #{tpu_custom_call.1} parent=27 // pred_check_branch
          %337 = sbr.rel (%p335) target = $region44
        $region43: #{tpu_custom_call.1} parent=27 // pred_region
          %s338 = sand.u32 %s210, 1
          %s339 = scalar_lea.sflag [#allocation11], %s338
          %s340 = sand.u32 %s210, 1
          %s341 = smul.addr %s340, 8
          %s342 = scalar_lea.vmem [#allocation10], %s341
          %s343 = sadd.s32 %s30, %s31
          %p344 = scmp.lt.s32.totalorder %s343, 0
          %s345 = scalar_select %p344, %s343, 0
          %347 = vsyncadd %s339, 0
          %s348 = smul.addr %s345, 8
          %s349 = scalar_lea.hbm %s6, %s348
          %s351 = sshll.u32 %s349, 4
          %s352 = int_to_ptr.hbm [resolvable:$true] %s351
          %s353 = sshll.u32 %s342, 4
          %s354 = int_to_ptr.vmem [resolvable:$true] %s353
          %356 = dma.hbm_to_vmem [thread:$0]  %s352, 128, %s354, %s339
        $region44: #{tpu_custom_call.1} parent=27 // pred_fallthru
          _
      $region28: #{tpu_custom_call.1} parent=5 // pred_fallthru
        _
      %p357 = scmp.le.s32.totalorder 1, %s23
      %p358 = scmp.lt.s32.totalorder %s23, 3
      %p359 = pnand %p357, %p358
      %p360 = pneg %p359
      // Predicated region
      $region45: #{tpu_custom_call.1} parent=5 // pred_check
        _
      $region46: #{tpu_custom_call.1} parent=5 // pred_check_branch
        %362 = sbr.rel (%p359) target = $region48
      $region47: #{tpu_custom_call.1} parent=5 // pred_region
        %s363 = ssub.s32 %s23, 1
        // Predicated region
        $region49: #{tpu_custom_call.1} parent=47 // pred_check
          %p364 = pneg %p56
        $region50: #{tpu_custom_call.1} parent=47 // pred_check_branch
          %366 = sbr.rel (%p364) target = $region52
        $region51: #{tpu_custom_call.1} parent=47 // pred_region
          %368 = dma.done [#allocation8], 16
        $region52: #{tpu_custom_call.1} parent=47 // pred_fallthru
          _
        %s369 = sand.u32 %s181, 1
        %s370 = scalar_lea.sflag [#allocation6], %s369
        %s371 = sand.u32 %s181, 1
        %s372 = smul.addr %s371, 8
        %s373 = scalar_lea.vmem [#allocation9], %s372
        // Predicated region
        $region53: #{tpu_custom_call.1} parent=47 // pred_check
          %p374 = pneg %p194
        $region54: #{tpu_custom_call.1} parent=47 // pred_check_branch
          %376 = sbr.rel (%p374) target = $region56
        $region55: #{tpu_custom_call.1} parent=47 // pred_region
          %378 = dma.done %s370, 128
        $region56: #{tpu_custom_call.1} parent=47 // pred_fallthru
          _
        %s379 = sand.u32 %s213, 1
        %s380 = scalar_lea.sflag [#allocation11], %s379
        %s381 = sand.u32 %s213, 1
        %s382 = smul.addr %s381, 8
        %s383 = scalar_lea.vmem [#allocation10], %s382
        // Predicated region
        $region57: #{tpu_custom_call.1} parent=47 // pred_check
          %p384 = pneg %p226
        $region58: #{tpu_custom_call.1} parent=47 // pred_check_branch
          %386 = sbr.rel (%p384) target = $region60
        $region59: #{tpu_custom_call.1} parent=47 // pred_region
          %388 = dma.done %s380, 128
        $region60: #{tpu_custom_call.1} parent=47 // pred_fallthru
          _
        %389 = sfence
        %p390 = pneg %p56
        %p391 = pneg %p53
        %s392 = sadd.s32 %s32, %s33
        %p393 = scmp.lt.s32.totalorder %s392, 0
        %s394 = scalar_select %p393, %s392, 0
        %p395 = scmp.lt.s32.totalorder %s394, 0
        %s396 = scalar_select %p395, %s394, 0
        %s397 = smul.addr %s396, 8
        %s398 = scalar_lea.vmem %s1, %s397
        %p399 = pneg %p88
        %p400 = pneg %p85
        %s401 = sadd.s32 %s32, %s33
        %p402 = scmp.lt.s32.totalorder %s401, 0
        %s403 = scalar_select %p402, %s401, 0
        %p404 = scmp.lt.s32.totalorder %s403, 0
        %s405 = scalar_select %p404, %s403, 0
        %s406 = smul.addr %s405, 8
        %s407 = scalar_lea.vmem %s2, %s406
        %p408 = pneg %p120
        %p409 = pneg %p117
        %p410 = pneg %p141
        %p411 = pneg %p138
        %p412 = pneg %p162
        %p413 = pneg %p159
        %s414 = sand.u32 %s181, 1
        %s415 = scalar_lea.sflag [#allocation6], %s414
        %s416 = sand.u32 %s181, 1
        %s417 = smul.addr %s416, 8
        %s418 = scalar_lea.vmem [#allocation9], %s417
        %p419 = pneg %p194
        %p420 = pneg %p191
        %s421 = sand.u32 %s213, 1
        %s422 = scalar_lea.sflag [#allocation11], %s421
        %s423 = sand.u32 %s213, 1
        %s424 = smul.addr %s423, 8
        %s425 = scalar_lea.vmem [#allocation10], %s424
        %p426 = pneg %p226
        %p427 = pneg %p223
        %p428 = pneg %p252
        %p429 = pneg %p249
        %s430 = sand.u32 %s239, 1
        %s431 = scalar_lea.sflag [#allocation7], %s430
        %s432 = sand.u32 %s239, 1
        %s433 = smul.addr %s432, 8
        %s434 = scalar_lea.vmem [#allocation12], %s433
        %s435 = sadd.s32 %s32, %s33
        %p436 = scmp.lt.s32.totalorder %s435, 0
        %s437 = scalar_select %p436, %s435, 0
        %p438 = scmp.lt.s32.totalorder %s437, 0
        %s439 = scalar_select %p438, %s437, 0
        %s440 = smul.addr %s439, 8
        %s441 = scalar_lea.vmem %s1, %s440
        %s442 = sadd.s32 %s32, %s33
        %p443 = scmp.lt.s32.totalorder %s442, 0
        %s444 = scalar_select %p443, %s442, 0
        %s445 = sadd.s32 %s32, %s33
        %p446 = scmp.lt.s32.totalorder %s445, 0
        %s447 = scalar_select %p446, %s445, 0
        %p448 = scmp.lt.s32.totalorder %s447, 0
        %s449 = scalar_select %p448, %s447, 0
        %s450 = smul.addr %s449, 8
        %s451 = scalar_lea.vmem %s2, %s450
        %s452 = sadd.s32 %s32, %s33
        %p453 = scmp.lt.s32.totalorder %s452, 0
        %s454 = scalar_select %p453, %s452, 0
        %s455 = sadd.s32 %s32, %s33
        %p456 = scmp.lt.s32.totalorder %s455, 0
        %s457 = scalar_select %p456, %s455, 0
        %s458 = sadd.s32 %s32, %s33
        %p459 = scmp.lt.s32.totalorder %s458, 0
        %s460 = scalar_select %p459, %s458, 0
        %p461 = scmp.eq.s32.totalorder %s33, 0
        // Predicated region
        $region61: #{tpu_custom_call.1} parent=47 // pred_check
          %p462 = pneg %p461
        $region62: #{tpu_custom_call.1} parent=47 // pred_check_branch
          %464 = sbr.rel (%p462) target = $region64
        $region63: #{tpu_custom_call.1} parent=47 // pred_region
          %vm465 = vcmask 0
          %466 = vst.msk [vmem:[#allocation2] sm:$0x1] %vm465, 0.0
          %467 = vst.msk [vmem:[#allocation3] sm:$0x1] %vm465, 0.0
          %468 = vst.msk [vmem:[#allocation4] sm:$0x1] %vm465, 0.0
        $region64: #{tpu_custom_call.1} parent=47 // pred_fallthru
          _
        %p469 = scmp.eq.s32.totalorder %s32, 0
        %p470 = pnand %p461, %p469
        %p471 = pneg %p470
        // Predicated region
        $region65: #{tpu_custom_call.1} parent=47 // pred_check
          _
        $region66: #{tpu_custom_call.1} parent=47 // pred_check_branch
          %473 = sbr.rel (%p470) target = $region68
        $region67: #{tpu_custom_call.1} parent=47 // pred_region
          %v474 = vld [vmem:[%s3] sm:$0xff]
          %v475 = vld [vmem:[%s4] sm:$0xff]
          %v476 = vld [vmem:[#allocation4] sm:$0x1]
          %v477 = vlog2.pop %v474
          %v478 = vmul.f32 %v477, 0.6931472
          %v479 = vmax.f32 %v478, -100.0
          %v480 = vsub.f32 1.0, %v474
          %v481 = vlog2.pop %v480
          %v482 = vmul.f32 %v481, 0.6931472
          %v483 = vmax.f32 %v482, -100.0
          %v484 = vsub.f32 %v479, %v483
          %v485 = vmul.f32 %v475, %v484
          %v486 = vadd.f32 %v485, %v483
          %v487 = vsub.f32 0.0, %v486
          %vm488 = vcmask 7168
          %v489 = vsel %vm488, %v487, 0.0
          %490 = vadd.xlane.f32.xlu0 %v489
          %v491 = vpop.xlane.xlu0 %490
          %v492 = vrot.slane %v491, 4
          %v493 = vadd.f32 %v491, %v492
          %v494 = vrot.slane %v493, 2
          %v495 = vadd.f32 %v493, %v494
          %v496 = vrot.slane %v495, 1
          %v497 = vadd.f32 %v495, %v496
          %s498 = vtos %v497
          %v499 = vstv %s498
          %v500 = vadd.f32 %v476, %v499
          %vm501 = vcmask 0
          %502 = vst.msk [vmem:[#allocation4] sm:$0x1] %vm501, %v500
        $region68: #{tpu_custom_call.1} parent=47 // pred_fallthru
          _
        %s503 = sadd.s32 %s32, %s33
        %s504 = smul.u32 %s503, 8
        %v505 = vlaneseq
        %v506 = vshrl.u32 %v505, 7
        %v507 = vstv %s504
        %v508 = vadd.s32 %v507, %v506
        %vm509 = vcmp.lt.s32.totalorder %v508, 8
        %v510 = vld [vmem:[%s441] sm:$0xff]
        %v511 = vsel %vm509, 1, 0
        %vm512 = vcmp.eq.s32.totalorder %v511, 1
        %v513 = vsel %vm512, %v510, 1.0
        %v514 = vld [vmem:[%s451] sm:$0xff]
        %v515 = vsel %vm512, %v514, 1.0
        %v516 = vld [vmem:[#allocation2] sm:$0x1]
        %v517 = vlog2.pop %v513
        %v518 = vmul.f32 %v517, 0.6931472
        %v519 = vmax.f32 %v518, -100.0
        %v520 = vsub.f32 1.0, %v513
        %v521 = vlog2.pop %v520
        %v522 = vmul.f32 %v521, 0.6931472
        %v523 = vmax.f32 %v522, -100.0
        %v524 = vsub.f32 %v519, %v523
        %v525 = vmul.f32 %v515, %v524
        %v526 = vadd.f32 %v525, %v523
        %v527 = vsub.f32 0.0, %v526
        %vm528 = vcmask 130048
        %v529 = vsel %vm528, %v527, 0.0
        %530 = vadd.xlane.f32.xlu0 %v529
        %v531 = vpop.xlane.xlu0 %530
        %v532 = vrot.slane %v531, 4
        %v533 = vadd.f32 %v531, %v532
        %v534 = vrot.slane %v533, 2
        %v535 = vadd.f32 %v533, %v534
        %v536 = vrot.slane %v535, 1
        %v537 = vadd.f32 %v535, %v536
        %s538 = vtos %v537
        %v539 = vstv %s538
        %v540 = vadd.f32 %v516, %v539
        %vm541 = vcmask 0
        %542 = vst.msk [vmem:[#allocation2] sm:$0x1] %vm541, %v540
        %v543 = vld [vmem:[%s373] sm:$0xff]
        %v544 = vsel %vm512, %v543, 0.0
        %v545 = vld [vmem:[%s383] sm:$0xff]
        %v546 = vsel %vm512, %v545, 0.0
        %v547 = vld [vmem:[#allocation3] sm:$0x1]
        %v548 = vmul.f32 %v546, 1.442695
        %v549 = vpow.pop %v548
        %v550 = vsub.f32 %v549, %v546
        %v551 = vsub.f32 %v550, 1.0
        %v552 = vmul.f32 %v544, %v544
        %v553 = vadd.f32 %v551, %v552
        %vm554 = vcmask 261120
        %v555 = vsel %vm554, %v553, 0.0
        %556 = vadd.xlane.f32.xlu0 %v555
        %v557 = vpop.xlane.xlu0 %556
        %v558 = vrot.slane %v557, 4
        %v559 = vadd.f32 %v557, %v558
        %v560 = vrot.slane %v559, 2
        %v561 = vadd.f32 %v559, %v560
        %v562 = vrot.slane %v561, 1
        %v563 = vadd.f32 %v561, %v562
        %s564 = vtos %v563
        %v565 = vstv %s564
        %v566 = vadd.f32 %v547, %v565
        %567 = vst.msk [vmem:[#allocation3] sm:$0x1] %vm541, %v566
        // Predicated region
        $region69: #{tpu_custom_call.1} parent=47 // pred_check
          %p568 = pneg %p461
        $region70: #{tpu_custom_call.1} parent=47 // pred_check_branch
          %570 = sbr.rel (%p568) target = $region72
        $region71: #{tpu_custom_call.1} parent=47 // pred_region
          %v571 = vld [vmem:[#allocation2] sm:$0x1]
          %s572 = sld [smem:[#allocation5]]
          %v573 = vstv %s572
          %v574 = vmul.f32 %v571, %v573
          %v575 = vld [vmem:[#allocation4] sm:$0x1]
          %s576 = sld [smem:[#allocation5 + $0x1]]
          %v577 = vstv %s576
          %v578 = vmul.f32 %v575, %v577
          %v579 = vadd.f32 %v574, %v578
          %v580 = vld [vmem:[#allocation3] sm:$0x1]
          %s581 = sld [smem:[#allocation5 + $0x2]]
          %v582 = vstv %s581
          %v583 = vmul.f32 %v580, %v582
          %v584 = vadd.f32 %v579, %v583
          %v586 = vperm.slane %v584, 0
          %587 = vset.pattern.permute.xlu0 0
          %588 = vperm.xlu0 %587, %v586
          %v589 = vpop.permute.xlu0 %588
          %591 = vst [vmem:[%s434] sm:$0xff] %v589
        $region72: #{tpu_custom_call.1} parent=47 // pred_fallthru
          _
        %s592 = sand.u32 %s239, 1
        %s593 = scalar_lea.sflag [#allocation7], %s592
        %s594 = sand.u32 %s239, 1
        %s595 = smul.addr %s594, 8
        %s596 = scalar_lea.vmem [#allocation12], %s595
        // Predicated region
        $region73: #{tpu_custom_call.1} parent=47 // pred_check
          %p597 = pneg %p249
        $region74: #{tpu_custom_call.1} parent=47 // pred_check_branch
          %599 = sbr.rel (%p597) target = $region76
        $region75: #{tpu_custom_call.1} parent=47 // pred_region
          %601 = vsyncadd %s593, 0
          %s602 = smul.addr %s32, 8
          %s603 = scalar_lea.hbm %s7, %s602
          %s605 = sshll.u32 %s596, 4
          %s606 = int_to_ptr.vmem [resolvable:$true] %s605
          %s607 = sshll.u32 %s603, 4
          %s608 = int_to_ptr.hbm [resolvable:$true] %s607
          %610 = dma.vmem_to_hbm [thread:$0]  %s606, 128, %s608, %s593
        $region76: #{tpu_custom_call.1} parent=47 // pred_fallthru
          _
      $region48: #{tpu_custom_call.1} parent=5 // pred_fallthru
        _
      %p611 = scmp.le.s32.totalorder 2, %s23
      // Predicated region
      $region77: #{tpu_custom_call.1} parent=5 // pred_check
        %p612 = pneg %p611
      $region78: #{tpu_custom_call.1} parent=5 // pred_check_branch
        %614 = sbr.rel (%p612) target = $region80
      $region79: #{tpu_custom_call.1} parent=5 // pred_region
        %s615 = ssub.s32 %s23, 2
        // Predicated region
        $region81: #{tpu_custom_call.1} parent=79 // pred_check
          %p616 = pneg %p255
        $region82: #{tpu_custom_call.1} parent=79 // pred_check_branch
          %618 = sbr.rel (%p616) target = $region84
        $region83: #{tpu_custom_call.1} parent=79 // pred_region
          %s619 = sand.u32 %s240, 1
          %s620 = scalar_lea.sflag [#allocation7], %s619
          %s621 = sand.u32 %s240, 1
          %s622 = smul.addr %s621, 8
          %s623 = scalar_lea.vmem [#allocation12], %s622
          %625 = dma.done %s620, 128
        $region84: #{tpu_custom_call.1} parent=79 // pred_fallthru
          _
      $region80: #{tpu_custom_call.1} parent=5 // pred_fallthru
        _
    $region6: #{tpu_custom_call.1} parent=1 // loop_footer
      %s27 = sadd.s32 1, %s23
    $region7: #{tpu_custom_call.1} parent=1 // loop_footer_branch
      %22 = sbr.rel target = $region3
    $region8: #{tpu_custom_call.1} parent=1 // loop_exit
      _
    %626 = vsyncpa [#allocation6], 1
    %s627 = scalar_lea.sflag [#allocation6], 1
    %628 = vsyncpa %s627, 1
    %629 = vsyncpa [#allocation11], 1
    %s630 = scalar_lea.sflag [#allocation11], 1
    %631 = vsyncpa %s630, 1
    %632 = vsyncpa [#allocation7], 1
    %s633 = scalar_lea.sflag [#allocation7], 1
    %634 = vsyncpa %s633, 1
    %635 = vsyncpa [#allocation8], 1
    %s636 = scalar_lea.sflag [#allocation8], 1
    %637 = vsyncpa %s636, 1

</llo_original>
